<compile_context>
chip_gen: v6e
topology: v6e:2x2x1
jax: 0.10.0
libtpu: 0.0.40
codegen_flags: <defaults>
</compile_context>

<pallas_src>
import functools
import numpy as np
import jax
import jax.numpy as jnp
from jax import lax
from jax.experimental import pallas as pl
from jax.experimental.pallas import tpu as pltpu


def _round_up(a, m):
    return -(-a // m) * m


# -----------------------------------------------------------------------------
# Pallas kernels
# -----------------------------------------------------------------------------
def _conv_tap_matmul_kernel(w_ref, x_ref, o_ref, p_ref, *, cin, tap_offsets,
                            tile_n):
    """Fused im2col + matmul for one (sample, flat-pixel tile), stride == 1.

    w_ref: [1, K, Cout]   tap-major dynamic weights (K = KH*KW*Cin)
    x_ref: [1, NQx, Cin]  padded sample, channels-last, flattened pixels
    o_ref: [1, TN, Cout]  output tile on the Ho x Wp (garbage-column) grid
    p_ref: VMEM [TN, K]   patch scratch (built in-kernel, never hits HBM)
    """
    q0 = pl.multiple_of(pl.program_id(1) * tile_n, 128)
    for t, off in enumerate(tap_offsets):
        # Dynamic-start sublane slice of the resident input block.
        p_ref[:, pl.ds(t * cin, cin)] = x_ref[0, pl.ds(q0 + off, tile_n), :]
    acc = jnp.dot(p_ref[...], w_ref[0], preferred_element_type=jnp.float32)
    o_ref[0] = acc.astype(o_ref.dtype)


def _conv_matmul_kernel(w_ref, p_ref, o_ref):
    """Fallback (stride != 1): matmul over precomputed bf16 im2col patches.

    w_ref: [1, Cout, K]; p_ref: [1, K, TN]; o_ref: [1, Cout, TN]
    """
    acc = jnp.dot(w_ref[0], p_ref[0], preferred_element_type=jnp.float32)
    o_ref[0] = acc.astype(o_ref.dtype)


# -----------------------------------------------------------------------------
# Module
# -----------------------------------------------------------------------------
class DynamicConv2DDeltaPallas:
    def __init__(self, in_channels, out_channels, context_length, rank=4,
                 initialization_std=1e-4, kernel_size=(3, 3), stride=(1, 1),
                 padding=(0, 0, 0, 0), padding_dynamic=True, dilation=(1, 1),
                 transpose=False, dtype_weights=jnp.bfloat16, dtype_out=None,
                 seed=1234):
        if isinstance(kernel_size, int):
            kernel_size = [kernel_size, kernel_size]
        if isinstance(stride, int):
            stride = [stride, stride]
        if isinstance(padding, int):
            padding = [padding, padding, padding, padding]
        if isinstance(dilation, int):
            dilation = [dilation, dilation]

        self.in_channels = int(in_channels)
        self.out_channels = int(out_channels)
        self.context_length = int(context_length)
        self.rank = int(rank)
        self.kernel_size = list(kernel_size)
        self.stride = list(stride)
        self.padding = list(padding)
        self.padding_dynamic = bool(padding_dynamic)
        self.dilation = list(dilation)
        self.transpose = bool(transpose)
        self.dtype_weights = dtype_weights
        self.dtype_out = dtype_out          # None -> x.dtype (bf16 helps v5e)

        self.conv_weights_shape = [self.out_channels, self.in_channels,
                                   self.kernel_size[0], self.kernel_size[1]]
        shape = self._fit_shape(
            [self.conv_weights_shape[0] * self.conv_weights_shape[2],
             self.conv_weights_shape[1] * self.conv_weights_shape[3]])
        self.dynamic_weights_inversion = shape[0] < shape[1]
        self.dynamic_weights_shape = (shape[::-1]
                                      if self.dynamic_weights_inversion
                                      else shape)

        # Static gather indices: flat dynamic-weight index -> conv layout, and
        # the fused [K, Cout] tap-major layout (K index = (i*KW + j)*Cin + c).
        idx_conv = self._create_index()                      # [Cout,Cin,KH,KW]
        self._conv_index = jnp.asarray(idx_conv.reshape(-1), dtype=jnp.int32)
        idx_kc = np.transpose(idx_conv, (2, 3, 1, 0)).reshape(-1)
        self._kc_index = jnp.asarray(idx_kc, dtype=jnp.int32)

        # Deterministic synthetic parameters (shapes follow the module config).
        d0, d1 = self.dynamic_weights_shape
        L = self.context_length
        key = jax.random.PRNGKey(seed)
        k1, k2, k3, k4 = jax.random.split(key, 4)
        self.base = (jax.random.normal(k1, (d0, d1), jnp.float32)
                     * initialization_std).astype(dtype_weights)
        self.p_left_T = (jax.random.normal(k2, (self.rank, d0, L), jnp.float32)
                         * 0.05).astype(dtype_weights)
        self.p_right = (jax.random.normal(k3, (self.rank, L, d1), jnp.float32)
                        * 0.05).astype(dtype_weights)
        self.padding_dynamic_value = (
            jax.random.normal(k4, (), jnp.float32) * 0.001
        ).astype(dtype_weights)

    # -- shape / index plumbing (mirrors the PyTorch module) ------------------
    def _fit_shape(self, shape):
        mx, mn = max(shape), min(shape)
        ks = self.kernel_size
        if (mx % 2 == 0 and mx / 2 > mn and
            ((mx // 2 % ks[0] == 0 and mn ** 2 % ks[1] == 0) or
             (mx // 2 % ks[1] == 0 and mn ** 2 % ks[0] == 0))):
            return self._fit_shape([int(mx // 2), int(mn * 2)])
        return list(shape)

    def _create_index(self):
        """Index in conv_weights_shape layout: conv_w[o,c,i,j] = dw_flat[idx]."""
        total = int(np.prod(self.conv_weights_shape))
        base_ids = np.arange(total, dtype=np.int64).reshape(
            self.dynamic_weights_shape)
        inv = self.dynamic_weights_inversion
        axis_i = 1 if inv else 0
        axis_j = 0 if inv else 1
        ks = self.kernel_size
        num_blocks_i = self.dynamic_weights_shape[axis_i] // ks[0]
        num_blocks_j = self.dynamic_weights_shape[axis_j] // ks[1]
        block_div = num_blocks_i if inv else num_blocks_j
        num_blocks = num_blocks_i * num_blocks_j
        index = np.empty(self.conv_weights_shape, dtype=np.int64)
        for block_id in range(num_blocks):
            row_from = block_id // block_div * ks[axis_i]
            row_to = row_from + ks[axis_i]
            col_from = block_id % block_div * ks[axis_j]
            col_to = col_from + ks[axis_j]
            block = base_ids[row_from:row_to, col_from:col_to]
            block = block.T if inv else block
            oc = block_id % self.out_channels
            ic = block_id // self.out_channels
            index[oc, ic, :, :] = block
        return index

    # -- dynamic-weight composition (plain XLA: fuses with the gather) --------
    def _compose_weights(self, context):
        """[B_w, K, Cout] tap-major dynamic weights in dtype_weights."""
        B_w = context.shape[0]
        ctx = context.astype(jnp.float32)
        lmat = jnp.einsum("rdl,bl->bdr", self.p_left_T.astype(jnp.float32), ctx)
        rmat = jnp.einsum("rld,bl->brd", self.p_right.astype(jnp.float32), ctx)
        dw = (self.base.astype(jnp.float32)
              + jnp.einsum("bdr,bre->bde", lmat, rmat)).astype(self.dtype_weights)
        kh, kw = self.kernel_size
        K = kh * kw * self.in_channels
        w_kc = jnp.take(dw.reshape(B_w, -1), self._kc_index, axis=1)
        return w_kc.reshape(B_w, K, self.out_channels)

    # -- forward ----------------------------------------------------------------
    def __call__(self, x, context):
        if context.shape[0] != 1 and context.shape[0] != x.shape[0]:
            raise ValueError("context.shape[0] must be 1 or x.shape[0].")
        if self.transpose:
            # TODO(synk): conv_transpose2d path not implemented in Pallas.
            raise NotImplementedError("transposed dynamic conv not implemented")

        B, Cin, H, W = x.shape
        assert Cin == self.in_channels
        kh, kw = self.kernel_size
        sh, sw = self.stride
        dh, dw_ = self.dilation
        p_l, p_r, p_t, p_b = self.padding          # F.pad order: (l, r, t, b)

        Hp, Wp = H + p_t + p_b, W + p_l + p_r
        ho = (Hp - dh * (kh - 1) - 1) // sh + 1
        wo = (Wp - dw_ * (kw - 1) - 1) // sw + 1
        out_dtype = self.dtype_out if self.dtype_out is not None else x.dtype

        # Soft dynamic padding == pad with the learnable scalar (exact: the
        # reference module sets the padded region to padding_dynamic_value).
        pdv = (self.padding_dynamic_value if self.padding_dynamic
               else jnp.zeros((), self.dtype_weights))

        # bf16 (dtype_weights) BEFORE any padding / expansion: MXU operand
        # dtype and half the HBM bytes on every downstream stream.
        xw = x.astype(self.dtype_weights)
        xw = lax.pad(xw, pdv.astype(self.dtype_weights),
                     [(0, 0, 0), (0, 0, 0), (p_t, p_b, 0), (p_l, p_r, 0)])

        w_kc = self._compose_weights(context)                # [B_w, K, Cout]
        B_w = context.shape[0]
        # Shared-context dedup: constant weight block index => DMA'd once.
        w_idx = (lambda b, n: (b, 0, 0)) if B_w == B else (lambda b, n: (0, 0, 0))

        # Generation-aware VMEM budget (v7x 64 MiB vs 128 MiB on v5e/v6e).
        try:
            vmem_cap = int(pltpu.get_tpu_info().vmem_capacity_bytes)
        except Exception:
            vmem_cap = 64 << 20
        budget = max(int(vmem_cap * 0.80), 32 << 20)

        if sh == 1 and sw == 1:
            try:
                return self._forward_fused(xw, w_kc, w_idx, B, Cin, Hp, Wp,
                                           ho, wo, out_dtype, budget)
            except Exception:
                # Oversized config or lowering issue -> robust im2col fallback.
                pass
        return self._forward_im2col(xw, w_kc, w_idx, B, Cin, Hp, Wp,
                                    ho, wo, out_dtype, budget)

    # -- main path: in-kernel im2col (no patches stream through HBM) ----------
    def _forward_fused(self, xw, w_kc, w_idx, B, Cin, Hp, Wp, ho, wo,
                       out_dtype, budget):
        kh, kw = self.kernel_size
        dh, dw_ = self.dilation
        cout = self.out_channels
        K = kh * kw * Cin

        # Output is computed on the Ho x Wp grid (extra "garbage" columns so
        # every tap is a contiguous slice of the flattened input); the invalid
        # columns are sliced away in the wrapper.
        NQ = ho * Wp
        off_max = (kh - 1) * dh * Wp + (kw - 1) * dw_
        taps_off = tuple(i * dh * Wp + j * dw_
                         for i in range(kh) for j in range(kw))

        wbytes = jnp.dtype(self.dtype_weights).itemsize
        obytes = jnp.dtype(out_dtype).itemsize
        cin_l = _round_up(Cin, 128)
        k_l = _round_up(K, 128)
        cout_l = _round_up(cout, 128)

        def step_bytes(tn):
            nqx = _round_up(NQ, tn) + off_max
            return (2 * _round_up(nqx, 8) * cin_l * wbytes      # x block (x2 buf)
                    + 2 * _round_up(K, 8) * cout_l * wbytes     # weight block
                    + _round_up(tn, 8) * k_l * wbytes           # patch scratch
                    + 2 * _round_up(tn, 8) * cout_l * obytes    # output block
                    + (2 << 20))                                # headroom

        # Largest lane-dense (multiple-of-128) flat-pixel tile fitting VMEM.
        nq128 = _round_up(NQ, 128)
        tile_n = min(nq128, 4096)
        while tile_n > 128 and step_bytes(tile_n) > budget:
            tile_n -= 128
        if step_bytes(tile_n) > budget:
            raise ValueError("fused conv tile does not fit in VMEM")
        # Only force >=2 spatial tiles when there is no batch axis to pipeline.
        if B == 1 and tile_n >= nq128 and nq128 >= 256:
            tile_n = _round_up(nq128 // 2, 128)

        NQ_pad = _round_up(NQ, tile_n)
        n_tiles = NQ_pad // tile_n
        NQx = NQ_pad + off_max

        # Channels-last flattened input; padded so every tap window is valid.
        x_flat = jnp.transpose(xw, (0, 2, 3, 1)).reshape(B, Hp * Wp, Cin)
        x_flat = jnp.pad(x_flat, ((0, 0), (0, NQx - Hp * Wp), (0, 0)))

        kernel = functools.partial(_conv_tap_matmul_kernel, cin=Cin,
                                   tap_offsets=taps_off, tile_n=tile_n)
        out_flat = pl.pallas_call(
            kernel,
            out_shape=jax.ShapeDtypeStruct((B, NQ_pad, cout), out_dtype),
            grid=(B, n_tiles),
            in_specs=[
                pl.BlockSpec((1, K, cout), w_idx),
                pl.BlockSpec((1, NQx, Cin), lambda b, n: (b, 0, 0)),
            ],
            out_specs=pl.BlockSpec((1, tile_n, cout), lambda b, n: (b, n, 0)),
            scratch_shapes=[pltpu.VMEM((tile_n, K), self.dtype_weights)],
            compiler_params=pltpu.CompilerParams(
                dimension_semantics=("parallel", "parallel"),
                vmem_limit_bytes=int(budget)),
        )(w_kc, x_flat)

        out = out_flat[:, :NQ, :].reshape(B, ho, Wp, cout)[:, :, :wo, :]
        return jnp.transpose(out, (0, 3, 1, 2))

    # -- fallback: XLA im2col (bf16 before expansion) + matmul kernel ----------
    def _forward_im2col(self, xw, w_kc, w_idx, B, Cin, Hp, Wp, ho, wo,
                        out_dtype, budget):
        kh, kw = self.kernel_size
        sh, sw = self.stride
        dh, dw_ = self.dilation
        cout = self.out_channels
        K = kh * kw * Cin
        NP = ho * wo

        taps = []
        for i in range(kh):
            for j in range(kw):
                h0, w0 = i * dh, j * dw_
                taps.append(lax.slice(
                    xw, (0, 0, h0, w0),
                    (B, Cin, h0 + (ho - 1) * sh + 1, w0 + (wo - 1) * sw + 1),
                    (1, 1, sh, sw)))                      # [B, Cin, Ho, Wo] bf16
        patches = jnp.stack(taps, axis=1).reshape(B, K, NP)

        wbytes = jnp.dtype(self.dtype_weights).itemsize
        obytes = jnp.dtype(out_dtype).itemsize

        def step_bytes(tn):
            return (2 * _round_up(cout, 8) * _round_up(K, 128) * wbytes
                    + 2 * _round_up(K, 8) * tn * wbytes
                    + 2 * _round_up(cout, 8) * tn * obytes
                    + (2 << 20))

        np128 = _round_up(NP, 128)
        tile_n = min(np128, 4096)
        while tile_n > 128 and step_bytes(tile_n) > budget:
            tile_n -= 128
        NP_pad = _round_up(NP, tile_n)
        n_tiles = NP_pad // tile_n
        if NP_pad > NP:
            patches = jnp.pad(patches, ((0, 0), (0, 0), (0, NP_pad - NP)))

        w_ck = jnp.swapaxes(w_kc, 1, 2)                   # [B_w, Cout, K]
        out_flat = pl.pallas_call(
            _conv_matmul_kernel,
            out_shape=jax.ShapeDtypeStruct((B, cout, NP_pad), out_dtype),
            grid=(B, n_tiles),
            in_specs=[
                pl.BlockSpec((1, cout, K), w_idx),
                pl.BlockSpec((1, K, tile_n), lambda b, n: (b, 0, n)),
            ],
            out_specs=pl.BlockSpec((1, cout, tile_n), lambda b, n: (b, 0, n)),
            compiler_params=pltpu.CompilerParams(
                dimension_semantics=("parallel", "parallel"),
                vmem_limit_bytes=int(budget)),
        )(w_ck, patches)
        return out_flat[:, :, :NP].reshape(B, cout, ho, wo)

    # -- pure-JAX reference (torch.vmap(F.conv2d) semantics), for testing ------
    def reference_forward(self, x, context):
        B, Cin, H, W = x.shape
        kh, kw = self.kernel_size
        sh, sw = self.stride
        dh, dw_ = self.dilation
        p_l, p_r, p_t, p_b = self.padding
        pdv = (self.padding_dynamic_value.astype(jnp.float32)
               if self.padding_dynamic else jnp.zeros((), jnp.float32))
        x_pad = lax.pad(x.astype(jnp.float32), pdv,
                        [(0, 0, 0), (0, 0, 0), (p_t, p_b, 0), (p_l, p_r, 0)])

        ctx = context.astype(jnp.float32)
        lmat = jnp.einsum("rdl,bl->bdr", self.p_left_T.astype(jnp.float32), ctx)
        rmat = jnp.einsum("rld,bl->brd", self.p_right.astype(jnp.float32), ctx)
        dw = (self.base.astype(jnp.float32)
              + jnp.einsum("bdr,bre->bde", lmat, rmat)).astype(self.dtype_weights)

        B_w = context.shape[0]
        conv_w = jnp.take(dw.reshape(B_w, -1), self._conv_index, axis=1)
        conv_w = conv_w.reshape(B_w, self.out_channels, Cin, kh, kw)
        conv_w = conv_w.astype(jnp.float32)
        if B_w != B:
            conv_w = jnp.broadcast_to(conv_w, (B,) + conv_w.shape[1:])

        def one(xi, wi):
            return lax.conv_general_dilated(
                xi[None], wi, window_strides=(sh, sw), padding="VALID",
                rhs_dilation=(dh, dw_),
                dimension_numbers=("NCHW", "OIHW", "NCHW"))[0]

        return jax.vmap(one)(x_pad, conv_w)


# -----------------------------------------------------------------------------
# Demo
# -----------------------------------------------------------------------------
if __name__ == "__main__":
    B, Cin, Cout, H, W, L = 2, 4, 4, 16, 16, 32
    module = DynamicConv2DDeltaPallas(
        in_channels=Cin, out_channels=Cout, context_length=L, rank=4,
        kernel_size=[3, 3], stride=[1, 1], padding=[1, 1, 1, 1],
        padding_dynamic=True, dilation=[1, 1], transpose=False,
        dtype_weights=jnp.bfloat16, seed=1234)

    key = jax.random.PRNGKey(0)
    kx, kc = jax.random.split(key)
    x = jax.random.normal(kx, (B, Cin, H, W), jnp.float32)
    context = jax.random.normal(kc, (B, L), jnp.float32)

    # Per-sample contexts (fused in-kernel-im2col path).
    out = jax.block_until_ready(module(x, context))
    assert out.shape == (B, Cout, 16, 16), out.shape
    assert bool(jnp.all(jnp.isfinite(out)))

    # Check against a pure-JAX vmapped conv reference (bf16 MXU operands in
    # the Pallas path => loose tolerance).
    ref = jax.block_until_ready(module.reference_forward(x, context))
    err = float(jnp.max(jnp.abs(out - ref)))
    scale = float(jnp.max(jnp.abs(ref))) + 1.0
    assert err <= 5e-2 * scale, (err, scale)

    # Shared-context path (weights composed once, weight block DMA'd once).
    out_shared = jax.block_until_ready(module(x, context[:1]))
    assert out_shared.shape == (B, Cout, 16, 16), out_shared.shape
    assert bool(jnp.all(jnp.isfinite(out_shared)))

    # Strided config exercises the bf16 XLA-im2col fallback path.
    module_s = DynamicConv2DDeltaPallas(
        in_channels=Cin, out_channels=Cout, context_length=L, rank=4,
        kernel_size=[3, 3], stride=[2, 2], padding=[1, 1, 1, 1],
        padding_dynamic=True, dilation=[1, 1], transpose=False,
        dtype_weights=jnp.bfloat16, seed=7)
    out_s = jax.block_until_ready(module_s(x, context))
    ref_s = jax.block_until_ready(module_s.reference_forward(x, context))
    assert out_s.shape == ref_s.shape, (out_s.shape, ref_s.shape)
    err_s = float(jnp.max(jnp.abs(out_s - ref_s)))
    assert err_s <= 5e-2 * (float(jnp.max(jnp.abs(ref_s))) + 1.0), err_s

    print("KERNEL_OK")
</pallas_src>

<mosaic_0001>
module attributes {stable_mosaic.version = 11 : i64} {
  func.func @_conv_tap_matmul_kernel(%arg0: i32, %arg1: i32, %arg2: memref<1x36x4xbf16, #tpu.memory_space<vmem>>, %arg3: memref<1x422x4xbf16, #tpu.memory_space<vmem>>, %arg4: memref<1x384x4xf32, #tpu.memory_space<vmem>>, %arg5: memref<384x36xbf16, #tpu.memory_space<vmem>>) attributes {dimension_semantics = [#tpu.dimension_semantics<parallel>, #tpu.dimension_semantics<parallel>], iteration_bounds = array<i64: 2, 1>, scalar_prefetch = 0 : i64, scratch_operands = 1 : i64, tpu.core_type = #tpu.core_type<tc>, window_params = [{transform_indices = @transform_0, window_bounds = array<i64: 1, 36, 4>}, {transform_indices = @transform_1, window_bounds = array<i64: 1, 422, 4>}, {transform_indices = @transform_2, window_bounds = array<i64: 1, 384, 4>}]} {
    %c384_i32 = arith.constant 384 : i32
    %0 = arith.muli %arg1, %c384_i32 : i32
    %1 = tpu.assume_multiple %0, 128 : i32
    %c0_i32 = arith.constant 0 : i32
    %2 = arith.addi %1, %c0_i32 : i32
    %c0 = arith.constant 0 : index
    %3 = arith.index_cast %2 : i32 to index
    %c0_0 = arith.constant 0 : index
    %4 = vector.load %arg3[%c0, %3, %c0_0] : memref<1x422x4xbf16, #tpu.memory_space<vmem>>, vector<1x384x4xbf16>
    %5 = vector.shape_cast %4 : vector<1x384x4xbf16> to vector<384x4xbf16>
    %c0_1 = arith.constant 0 : index
    %c0_2 = arith.constant 0 : index
    %6 = vector.load %arg5[%c0_1, %c0_2] : memref<384x36xbf16, #tpu.memory_space<vmem>>, vector<384x4xbf16>
    tpu.vector_store %arg5[%c0_1, %c0_2], %5 {strides = array<i32>} : memref<384x36xbf16, #tpu.memory_space<vmem>>, vector<384x4xbf16>,
    %c1_i32 = arith.constant 1 : i32
    %7 = arith.addi %1, %c1_i32 : i32
    %c0_3 = arith.constant 0 : index
    %8 = arith.index_cast %7 : i32 to index
    %c0_4 = arith.constant 0 : index
    %9 = vector.load %arg3[%c0_3, %8, %c0_4] : memref<1x422x4xbf16, #tpu.memory_space<vmem>>, vector<1x384x4xbf16>
    %10 = vector.shape_cast %9 : vector<1x384x4xbf16> to vector<384x4xbf16>
    %c0_5 = arith.constant 0 : index
    %c4 = arith.constant 4 : index
    %11 = vector.load %arg5[%c0_5, %c4] : memref<384x36xbf16, #tpu.memory_space<vmem>>, vector<384x4xbf16>
    tpu.vector_store %arg5[%c0_5, %c4], %10 {strides = array<i32>} : memref<384x36xbf16, #tpu.memory_space<vmem>>, vector<384x4xbf16>,
    %c2_i32 = arith.constant 2 : i32
    %12 = arith.addi %1, %c2_i32 : i32
    %c0_6 = arith.constant 0 : index
    %13 = arith.index_cast %12 : i32 to index
    %c0_7 = arith.constant 0 : index
    %14 = vector.load %arg3[%c0_6, %13, %c0_7] : memref<1x422x4xbf16, #tpu.memory_space<vmem>>, vector<1x384x4xbf16>
    %15 = vector.shape_cast %14 : vector<1x384x4xbf16> to vector<384x4xbf16>
    %c0_8 = arith.constant 0 : index
    %c8 = arith.constant 8 : index
    %16 = vector.load %arg5[%c0_8, %c8] : memref<384x36xbf16, #tpu.memory_space<vmem>>, vector<384x4xbf16>
    tpu.vector_store %arg5[%c0_8, %c8], %15 {strides = array<i32>} : memref<384x36xbf16, #tpu.memory_space<vmem>>, vector<384x4xbf16>,
    %c18_i32 = arith.constant 18 : i32
    %17 = arith.addi %1, %c18_i32 : i32
    %c0_9 = arith.constant 0 : index
    %18 = arith.index_cast %17 : i32 to index
    %c0_10 = arith.constant 0 : index
    %19 = vector.load %arg3[%c0_9, %18, %c0_10] : memref<1x422x4xbf16, #tpu.memory_space<vmem>>, vector<1x384x4xbf16>
    %20 = vector.shape_cast %19 : vector<1x384x4xbf16> to vector<384x4xbf16>
    %c0_11 = arith.constant 0 : index
    %c12 = arith.constant 12 : index
    %21 = vector.load %arg5[%c0_11, %c12] : memref<384x36xbf16, #tpu.memory_space<vmem>>, vector<384x4xbf16>
    tpu.vector_store %arg5[%c0_11, %c12], %20 {strides = array<i32>} : memref<384x36xbf16, #tpu.memory_space<vmem>>, vector<384x4xbf16>,
    %c19_i32 = arith.constant 19 : i32
    %22 = arith.addi %1, %c19_i32 : i32
    %c0_12 = arith.constant 0 : index
    %23 = arith.index_cast %22 : i32 to index
    %c0_13 = arith.constant 0 : index
    %24 = vector.load %arg3[%c0_12, %23, %c0_13] : memref<1x422x4xbf16, #tpu.memory_space<vmem>>, vector<1x384x4xbf16>
    %25 = vector.shape_cast %24 : vector<1x384x4xbf16> to vector<384x4xbf16>
    %c0_14 = arith.constant 0 : index
    %c16 = arith.constant 16 : index
    %26 = vector.load %arg5[%c0_14, %c16] : memref<384x36xbf16, #tpu.memory_space<vmem>>, vector<384x4xbf16>
    tpu.vector_store %arg5[%c0_14, %c16], %25 {strides = array<i32>} : memref<384x36xbf16, #tpu.memory_space<vmem>>, vector<384x4xbf16>,
    %c20_i32 = arith.constant 20 : i32
    %27 = arith.addi %1, %c20_i32 : i32
    %c0_15 = arith.constant 0 : index
    %28 = arith.index_cast %27 : i32 to index
    %c0_16 = arith.constant 0 : index
    %29 = vector.load %arg3[%c0_15, %28, %c0_16] : memref<1x422x4xbf16, #tpu.memory_space<vmem>>, vector<1x384x4xbf16>
    %30 = vector.shape_cast %29 : vector<1x384x4xbf16> to vector<384x4xbf16>
    %c0_17 = arith.constant 0 : index
    %c20 = arith.constant 20 : index
    %31 = vector.load %arg5[%c0_17, %c20] : memref<384x36xbf16, #tpu.memory_space<vmem>>, vector<384x4xbf16>
    tpu.vector_store %arg5[%c0_17, %c20], %30 {strides = array<i32>} : memref<384x36xbf16, #tpu.memory_space<vmem>>, vector<384x4xbf16>,
    %c36_i32 = arith.constant 36 : i32
    %32 = arith.addi %1, %c36_i32 : i32
    %c0_18 = arith.constant 0 : index
    %33 = arith.index_cast %32 : i32 to index
    %c0_19 = arith.constant 0 : index
    %34 = vector.load %arg3[%c0_18, %33, %c0_19] : memref<1x422x4xbf16, #tpu.memory_space<vmem>>, vector<1x384x4xbf16>
    %35 = vector.shape_cast %34 : vector<1x384x4xbf16> to vector<384x4xbf16>
    %c0_20 = arith.constant 0 : index
    %c24 = arith.constant 24 : index
    %36 = vector.load %arg5[%c0_20, %c24] : memref<384x36xbf16, #tpu.memory_space<vmem>>, vector<384x4xbf16>
    tpu.vector_store %arg5[%c0_20, %c24], %35 {strides = array<i32>} : memref<384x36xbf16, #tpu.memory_space<vmem>>, vector<384x4xbf16>,
    %c37_i32 = arith.constant 37 : i32
    %37 = arith.addi %1, %c37_i32 : i32
    %c0_21 = arith.constant 0 : index
    %38 = arith.index_cast %37 : i32 to index
    %c0_22 = arith.constant 0 : index
    %39 = vector.load %arg3[%c0_21, %38, %c0_22] : memref<1x422x4xbf16, #tpu.memory_space<vmem>>, vector<1x384x4xbf16>
    %40 = vector.shape_cast %39 : vector<1x384x4xbf16> to vector<384x4xbf16>
    %c0_23 = arith.constant 0 : index
    %c28 = arith.constant 28 : index
    %41 = vector.load %arg5[%c0_23, %c28] : memref<384x36xbf16, #tpu.memory_space<vmem>>, vector<384x4xbf16>
    tpu.vector_store %arg5[%c0_23, %c28], %40 {strides = array<i32>} : memref<384x36xbf16, #tpu.memory_space<vmem>>, vector<384x4xbf16>,
    %c38_i32 = arith.constant 38 : i32
    %42 = arith.addi %1, %c38_i32 : i32
    %c0_24 = arith.constant 0 : index
    %43 = arith.index_cast %42 : i32 to index
    %c0_25 = arith.constant 0 : index
    %44 = vector.load %arg3[%c0_24, %43, %c0_25] : memref<1x422x4xbf16, #tpu.memory_space<vmem>>, vector<1x384x4xbf16>
    %45 = vector.shape_cast %44 : vector<1x384x4xbf16> to vector<384x4xbf16>
    %c0_26 = arith.constant 0 : index
    %c32 = arith.constant 32 : index
    %46 = vector.load %arg5[%c0_26, %c32] : memref<384x36xbf16, #tpu.memory_space<vmem>>, vector<384x4xbf16>
    tpu.vector_store %arg5[%c0_26, %c32], %45 {strides = array<i32>} : memref<384x36xbf16, #tpu.memory_space<vmem>>, vector<384x4xbf16>,
    %c0_27 = arith.constant 0 : index
    %c0_28 = arith.constant 0 : index
    %47 = vector.load %arg5[%c0_27, %c0_28] : memref<384x36xbf16, #tpu.memory_space<vmem>>, vector<384x36xbf16>
    %c0_29 = arith.constant 0 : index
    %c0_30 = arith.constant 0 : index
    %c0_31 = arith.constant 0 : index
    %48 = vector.load %arg2[%c0_29, %c0_30, %c0_31] : memref<1x36x4xbf16, #tpu.memory_space<vmem>>, vector<1x36x4xbf16>
    %49 = vector.shape_cast %48 : vector<1x36x4xbf16> to vector<36x4xbf16>
    %cst = arith.constant dense<0.000000e+00> : vector<384x4xf32>
    %50 = tpu.matmul %47, %49, %cst {dimension_numbers = #tpu.dot_dimension_numbers<[1], [0], [0], [1], [0, 0, 1, 1], [], []>} : vector<384x36xbf16>, vector<36x4xbf16>, vector<384x4xf32> -> vector<384x4xf32>
    %c0_32 = arith.constant 0 : index
    %c0_33 = arith.constant 0 : index
    %c0_34 = arith.constant 0 : index
    %51 = vector.load %arg4[%c0_32, %c0_33, %c0_34] : memref<1x384x4xf32, #tpu.memory_space<vmem>>, vector<1x384x4xf32>
    %52 = vector.shape_cast %51 : vector<1x384x4xf32> to vector<384x4xf32>
    %53 = vector.shape_cast %50 : vector<384x4xf32> to vector<1x384x4xf32>
    tpu.vector_store %arg4[%c0_32, %c0_33, %c0_34], %53 {strides = array<i32>} : memref<1x384x4xf32, #tpu.memory_space<vmem>>, vector<1x384x4xf32>,
    return
  }
  func.func @transform_0(%arg0: i32, %arg1: i32) -> (i32, i32, i32) {
    %c0_i32 = arith.constant 0 : i32
    %c0_i32_0 = arith.constant 0 : i32
    %c0_i32_1 = arith.constant 0 : i32
    return %arg0, %c0_i32, %c0_i32_0 : i32, i32, i32
  }
  func.func @transform_1(%arg0: i32, %arg1: i32) -> (i32, i32, i32) {
    %c0_i32 = arith.constant 0 : i32
    %c0_i32_0 = arith.constant 0 : i32
    %c0_i32_1 = arith.constant 0 : i32
    return %arg0, %c0_i32, %c0_i32_0 : i32, i32, i32
  }
  func.func @transform_2(%arg0: i32, %arg1: i32) -> (i32, i32, i32) {
    %c0_i32 = arith.constant 0 : i32
    %c0_i32_0 = arith.constant 0 : i32
    return %arg0, %arg1, %c0_i32 : i32, i32, i32
  }
}

module attributes {stable_mosaic.version = 11 : i64} {
  func.func @_conv_matmul_kernel(%arg0: i32, %arg1: i32, %arg2: memref<1x4x36xbf16, #tpu.memory_space<vmem>>, %arg3: memref<1x36x256xbf16, #tpu.memory_space<vmem>>, %arg4: memref<1x4x256xf32, #tpu.memory_space<vmem>>) attributes {dimension_semantics = [#tpu.dimension_semantics<parallel>, #tpu.dimension_semantics<parallel>], iteration_bounds = array<i64: 2, 1>, scalar_prefetch = 0 : i64, scratch_operands = 0 : i64, tpu.core_type = #tpu.core_type<tc>, window_params = [{transform_indices = @transform_0, window_bounds = array<i64: 1, 4, 36>}, {transform_indices = @transform_1, window_bounds = array<i64: 1, 36, 256>}, {transform_indices = @transform_2, window_bounds = array<i64: 1, 4, 256>}]} {
    %c0 = arith.constant 0 : index
    %c0_0 = arith.constant 0 : index
    %c0_1 = arith.constant 0 : index
    %0 = vector.load %arg2[%c0, %c0_0, %c0_1] : memref<1x4x36xbf16, #tpu.memory_space<vmem>>, vector<1x4x36xbf16>
    %1 = vector.shape_cast %0 : vector<1x4x36xbf16> to vector<4x36xbf16>
    %c0_2 = arith.constant 0 : index
    %c0_3 = arith.constant 0 : index
    %c0_4 = arith.constant 0 : index
    %2 = vector.load %arg3[%c0_2, %c0_3, %c0_4] : memref<1x36x256xbf16, #tpu.memory_space<vmem>>, vector<1x36x256xbf16>
    %3 = vector.shape_cast %2 : vector<1x36x256xbf16> to vector<36x256xbf16>
    %cst = arith.constant dense<0.000000e+00> : vector<4x256xf32>
    %4 = tpu.matmul %1, %3, %cst {dimension_numbers = #tpu.dot_dimension_numbers<[1], [0], [0], [1], [0, 0, 1, 1], [], []>} : vector<4x36xbf16>, vector<36x256xbf16>, vector<4x256xf32> -> vector<4x256xf32>
    %c0_5 = arith.constant 0 : index
    %c0_6 = arith.constant 0 : index
    %c0_7 = arith.constant 0 : index
    %5 = vector.load %arg4[%c0_5, %c0_6, %c0_7] : memref<1x4x256xf32, #tpu.memory_space<vmem>>, vector<1x4x256xf32>
    %6 = vector.shape_cast %5 : vector<1x4x256xf32> to vector<4x256xf32>
    %7 = vector.shape_cast %4 : vector<4x256xf32> to vector<1x4x256xf32>
    tpu.vector_store %arg4[%c0_5, %c0_6, %c0_7], %7 {strides = array<i32>} : memref<1x4x256xf32, #tpu.memory_space<vmem>>, vector<1x4x256xf32>,
    return
  }
  func.func @transform_0(%arg0: i32, %arg1: i32) -> (i32, i32, i32) {
    %c0_i32 = arith.constant 0 : i32
    %c0_i32_0 = arith.constant 0 : i32
    %c0_i32_1 = arith.constant 0 : i32
    return %arg0, %c0_i32, %c0_i32_0 : i32, i32, i32
  }
  func.func @transform_1(%arg0: i32, %arg1: i32) -> (i32, i32, i32) {
    %c0_i32 = arith.constant 0 : i32
    %c0_i32_0 = arith.constant 0 : i32
    return %arg0, %c0_i32, %arg1 : i32, i32, i32
  }
  func.func @transform_2(%arg0: i32, %arg1: i32) -> (i32, i32, i32) {
    %c0_i32 = arith.constant 0 : i32
    %c0_i32_0 = arith.constant 0 : i32
    return %arg0, %c0_i32, %arg1 : i32, i32, i32
  }
}

</mosaic_0001>

<llo_original>
// kernel: tpu_custom_call.1
$region0: #{tpu_custom_call.1}
  #allocation0 [shape = 'u32[]', space=smem, size = 0x4, offset = 0x4, fixed_abs, tag = 'smem constant byte address 0x4 - core index']
  #allocation1 [shape = 'u32[144,128]{1,0:T(1,128)}', space=vmem, size = 0x12000, scoped, tag = 'internal scratch']
  %s0 = inlined_call_operand.vmem [shape: bf16[2,4,36], index: 0, kind: input, shape index: {}]
  %s1 = inlined_call_operand.vmem [shape: bf16[2,36,256], index: 1, kind: input, shape index: {}]
  %s2 = inlined_call_operand.hbm [shape: f32[2,4,256], index: 2, kind: output, shape index: {}]
  %s3 = sld [smem:[#allocation0]]
  $region41: #{tpu_custom_call.1} parent=0
    _
  %s5 = ssub.s32 1, %s3
  %s6 = scalar_select 0, %s5, %s3
  $region1: #{tpu_custom_call.1} parent=0
    #allocation2 [shape = 'u8[8192]{0}', space=vmem, size = 0x2000, scoped, tag = 'output window, operand 0']
    #allocation3 [shape = 's32[2]{0}', space=sflag, size = 0x8, scoped, tag = 'scoped memory for tpu_custom_call.1']
    %7 = vsyncpa [#allocation3], 0
    %s8 = scalar_lea.sflag [#allocation3], 1
    %9 = vsyncpa %s8, 0
    loop: start=0, step=1, limit=4
    $region2: #{tpu_custom_call.1} parent=1 // loop_pre_header
      _
    $region3: #{tpu_custom_call.1} parent=1 // loop_header
      %s11 = sphi 0, %s15
      %p12 = scmp.ge.s32.totalorder %s11, 4
      %s18 = sphi 0, %s30
      %s19 = sphi 0, %s26
      %s20 = sphi 0, %s18
      %s21 = sphi 0, %s19
      %s22 = sphi 0, %s20
      %s23 = sphi 0, %s21
      %s33 = sphi 0, %s35
      %s36 = sphi 0, %s33
      %s37 = sphi 0, %s36
      %s53 = sphi 0, %s37
      %s61 = sphi 0, %s63
      %s64 = sphi 0, %s61
      %s65 = sphi 0, %s64
      %s81 = sphi 0, %s65
      %s89 = sphi 0, %s91
      %s92 = sphi 0, %s89
      %s93 = sphi 0, %s92
      %s109 = sphi 0, %s93
    $region4: #{tpu_custom_call.1} parent=1 // loop_header_branch
      %14 = sbr.rel (%p12) target = $region8
    $region5: #{tpu_custom_call.1} parent=1 // loop_body
      %s16 = ssub.s32 %s11, 1
      %s17 = ssub.s32 %s11, 2
      %s24 = sadd.s32 1, %s19
      %p25 = scmp.ge.s32.totalorder %s24, 1
      %s26 = scalar_select %p25, 0, %s24
      %s27 = sadd.s32 1, %s18
      %s28 = scalar_select %p25, %s27, %s18
      %p29 = scmp.ge.s32.totalorder %s28, 2
      %s30 = scalar_select %p29, 0, %s28
      %s31 = ssub.s32 %s18, %s30
      %p32 = scmp.eq.s32.totalorder %s31, 0
      %s34 = sadd.s32 %s33, 1
      %s35 = scalar_select %p32, %s33, %s34
      %p38 = pneg %p32
      %p39 = scmp.eq.s32.totalorder %s11, 1
      %p40 = por %p38, %p39
      %p41 = scmp.ne.s32.totalorder %s33, %s36
      %p42 = scmp.eq.s32.totalorder %s11, 0
      %p43 = por %p41, %p42
      %p44 = scmp.ne.s32.totalorder %s33, %s36
      %p45 = scmp.eq.s32.totalorder %s16, 1
      %p46 = por %p44, %p45
      %p47 = scmp.ne.s32.totalorder %s36, %s37
      %p48 = scmp.eq.s32.totalorder %s16, 0
      %p49 = por %p47, %p48
      %p50 = scmp.ne.s32.totalorder %s36, %s37
      %p51 = scmp.eq.s32.totalorder %s17, 1
      %p52 = por %p50, %p51
      %p54 = scmp.ne.s32.totalorder %s37, %s53
      %p55 = scmp.eq.s32.totalorder %s17, 0
      %p56 = por %p54, %p55
      %s57 = ssub.s32 %s18, %s30
      %s58 = ssub.s32 %s19, %s26
      %s59 = sor.u32 %s57, %s58
      %p60 = scmp.eq.s32.totalorder %s59, 0
      %s62 = sadd.s32 %s61, 1
      %s63 = scalar_select %p60, %s61, %s62
      %p66 = pneg %p60
      %p67 = scmp.eq.s32.totalorder %s11, 1
      %p68 = por %p66, %p67
      %p69 = scmp.ne.s32.totalorder %s61, %s64
      %p70 = scmp.eq.s32.totalorder %s11, 0
      %p71 = por %p69, %p70
      %p72 = scmp.ne.s32.totalorder %s61, %s64
      %p73 = scmp.eq.s32.totalorder %s16, 1
      %p74 = por %p72, %p73
      %p75 = scmp.ne.s32.totalorder %s64, %s65
      %p76 = scmp.eq.s32.totalorder %s16, 0
      %p77 = por %p75, %p76
      %p78 = scmp.ne.s32.totalorder %s64, %s65
      %p79 = scmp.eq.s32.totalorder %s17, 1
      %p80 = por %p78, %p79
      %p82 = scmp.ne.s32.totalorder %s65, %s81
      %p83 = scmp.eq.s32.totalorder %s17, 0
      %p84 = por %p82, %p83
      %s85 = ssub.s32 %s18, %s30
      %s86 = ssub.s32 %s19, %s26
      %s87 = sor.u32 %s85, %s86
      %p88 = scmp.eq.s32.totalorder %s87, 0
      %s90 = sadd.s32 %s89, 1
      %s91 = scalar_select %p88, %s89, %s90
      %p94 = pneg %p88
      %p95 = scmp.eq.s32.totalorder %s11, 1
      %p96 = por %p94, %p95
      %p97 = scmp.ne.s32.totalorder %s89, %s92
      %p98 = scmp.eq.s32.totalorder %s11, 0
      %p99 = por %p97, %p98
      %p100 = scmp.ne.s32.totalorder %s89, %s92
      %p101 = scmp.eq.s32.totalorder %s16, 1
      %p102 = por %p100, %p101
      %p103 = scmp.ne.s32.totalorder %s92, %s93
      %p104 = scmp.eq.s32.totalorder %s16, 0
      %p105 = por %p103, %p104
      %p106 = scmp.ne.s32.totalorder %s92, %s93
      %p107 = scmp.eq.s32.totalorder %s17, 1
      %p108 = por %p106, %p107
      %p110 = scmp.ne.s32.totalorder %s93, %s109
      %p111 = scmp.eq.s32.totalorder %s17, 0
      %p112 = por %p110, %p111
      %p113 = scmp.le.s32.totalorder 1, %s11
      %p114 = scmp.lt.s32.totalorder %s11, 3
      %p115 = pnand %p113, %p114
      %p116 = pneg %p115
      // Predicated region
      $region9: #{tpu_custom_call.1} parent=5 // pred_check
        _
      $region10: #{tpu_custom_call.1} parent=5 // pred_check_branch
        %118 = sbr.rel (%p115) target = $region12
      $region11: #{tpu_custom_call.1} parent=5 // pred_region
        %s119 = ssub.s32 %s11, 1
      $region12: #{tpu_custom_call.1} parent=5 // pred_fallthru
        _
      %p120 = scmp.lt.s32.totalorder %s11, 2
      // Predicated region
      $region13: #{tpu_custom_call.1} parent=5 // pred_check
        %p121 = pneg %p120
      $region14: #{tpu_custom_call.1} parent=5 // pred_check_branch
        %123 = sbr.rel (%p121) target = $region16
      $region15: #{tpu_custom_call.1} parent=5 // pred_region
        // Predicated region
        $region17: #{tpu_custom_call.1} parent=15 // pred_check
          %p124 = pneg %p43
        $region18: #{tpu_custom_call.1} parent=15 // pred_check_branch
          %126 = sbr.rel (%p124) target = $region20
        $region19: #{tpu_custom_call.1} parent=15 // pred_region
          %p127 = scmp.lt.s32.totalorder %s18, 1
          %s128 = scalar_select %p127, %s18, 1
          %s129 = smul.addr %s128, 2
          %s130 = scalar_lea.vmem %s0, %s129
        $region20: #{tpu_custom_call.1} parent=15 // pred_fallthru
          _
        // Predicated region
        $region21: #{tpu_custom_call.1} parent=15 // pred_check
          %p131 = pneg %p71
        $region22: #{tpu_custom_call.1} parent=15 // pred_check_branch
          %133 = sbr.rel (%p131) target = $region24
        $region23: #{tpu_custom_call.1} parent=15 // pred_region
          %s134 = smul.u32 2, %s19
          %p135 = scmp.lt.s32.totalorder %s18, 1
          %s136 = scalar_select %p135, %s18, 1
          %p137 = scmp.lt.s32.totalorder %s134, 1
          %s138 = scalar_select %p137, %s134, 1
          %s139 = smul.addr %s136, 10
          %s140 = sadd.s32 %s138, %s139
          %s141 = smul.addr %s140, 4
          %s142 = scalar_lea.vmem %s1, %s141
          %s143 = smul.u32 2, %s19
        $region24: #{tpu_custom_call.1} parent=15 // pred_fallthru
          _
      $region16: #{tpu_custom_call.1} parent=5 // pred_fallthru
        _
      %p144 = scmp.le.s32.totalorder 1, %s11
      %p145 = scmp.lt.s32.totalorder %s11, 3
      %p146 = pnand %p144, %p145
      %p147 = pneg %p146
      // Predicated region
      $region25: #{tpu_custom_call.1} parent=5 // pred_check
        _
      $region26: #{tpu_custom_call.1} parent=5 // pred_check_branch
        %149 = sbr.rel (%p146) target = $region28
      $region27: #{tpu_custom_call.1} parent=5 // pred_region
        %s150 = ssub.s32 %s11, 1
        %p151 = scmp.lt.s32.totalorder %s20, 1
        %s152 = scalar_select %p151, %s20, 1
        %s153 = smul.addr %s152, 2
        %s154 = scalar_lea.vmem %s0, %s153
        %p155 = pneg %p49
        %p156 = pneg %p46
        %s157 = smul.u32 2, %s21
        %p158 = scmp.lt.s32.totalorder %s20, 1
        %s159 = scalar_select %p158, %s20, 1
        %p160 = scmp.lt.s32.totalorder %s157, 1
        %s161 = scalar_select %p160, %s157, 1
        %s162 = smul.addr %s159, 10
        %s163 = sadd.s32 %s161, %s162
        %s164 = smul.addr %s163, 4
        %s165 = scalar_lea.vmem %s1, %s164
        %p166 = pneg %p77
        %p167 = pneg %p74
        %p168 = pneg %p105
        %p169 = pneg %p102
        %s170 = sand.u32 %s92, 1
        %s171 = scalar_lea.sflag [#allocation3], %s170
        %s172 = sand.u32 %s92, 1
        %s173 = smul.addr %s172, 8
        %s174 = scalar_lea.vmem [#allocation2], %s173
        %p175 = scmp.lt.s32.totalorder %s20, 1
        %s176 = scalar_select %p175, %s20, 1
        %s177 = smul.addr %s176, 2
        %s178 = scalar_lea.vmem %s0, %s177
        %s179 = smul.u32 2, %s21
        %p180 = scmp.lt.s32.totalorder %s20, 1
        %s181 = scalar_select %p180, %s20, 1
        %p182 = scmp.lt.s32.totalorder %s179, 1
        %s183 = scalar_select %p182, %s179, 1
        %s184 = smul.addr %s181, 10
        %s185 = sadd.s32 %s183, %s184
        %s186 = smul.addr %s185, 4
        %s187 = scalar_lea.vmem %s1, %s186
        %s188 = smul.u32 2, %s21
        %s189 = smul.u32 2, %s21
        %v191 = vld [vmem:[%s178] sm:$0x3]
        %v192 = vld [vmem:[%s187] sm:$0xff]
        %v193 = vld [vmem:[%s187 + $0x8] sm:$0xff]
        %v194 = vld [vmem:[%s187 + $0x10] sm:$0xff]
        %v195 = vld [vmem:[%s187 + $0x18] sm:$0xff]
        %v196 = vld [vmem:[%s187 + $0x20] sm:$0x33]
        %v202 = vunpack.c.l.b16 %v192
        %v203 = vunpack.c.h.b16 %v192
        %v204 = vunpack.c.l.b16 %v193
        %v205 = vunpack.c.h.b16 %v193
        %v206 = vunpack.c.l.b16 %v194
        %v207 = vunpack.c.h.b16 %v194
        %v208 = vunpack.c.l.b16 %v195
        %v209 = vunpack.c.h.b16 %v195
        %v210 = vunpack.c.l.b16 %v196
        %v211 = vunpack.c.h.b16 %v196
        %v212 = vpack.c.b16 %v204, %v202
        %v213 = vpack.c.b16 %v205, %v203
        %v214 = vpack.c.b16 %v208, %v206
        %v215 = vpack.c.b16 %v209, %v207
        %v216 = vpack.c.b16 %v210, %v210
        %v217 = vpack.c.b16 %v211, %v211
        %vm222 = vcmask 293888
        %v224 = vsel %vm222, %v191, 0
        %vm226 = vcmask 1041408
        %v228 = vsel %vm226, %v216, 0
        %v231 = vsel %vm226, %v217, 0
        %233 = vmatprep.subr.bf16.mxu0 0
        %234 = vmatpush1.bf16.msra.mxu0 0
        %235 = vmatprep.subr.bf16.mxu0 0
        %236 = vmatpush1.bf16.msra.mxu0 0
        %237 = vmatprep.subr.bf16.mxu0 0
        %238 = vmatpush1.bf16.msra.mxu0 0
        %239 = vmatprep.subr.bf16.mxu0 0
        %240 = vmatpush1.bf16.msra.mxu0 0
        %241 = vmatprep.subr.bf16.mxu0 0
        %242 = vmatpush1.bf16.msra.mxu0 0
        %243 = vmatprep.subr.bf16.mxu0 %v231
        %244 = vmatpush1.bf16.msra.mxu0 %v228
        %245 = vmatprep.subr.bf16.mxu0 %v215
        %246 = vmatpush1.bf16.msra.mxu0 %v214
        %247 = vmatprep.subr.bf16.mxu0 %v213
        %248 = vmatpush1.bf16.msra.mxu0 %v212
        %249 = vmatprep.subr.bf16.mxu0 0
        %250 = vmatpush2.bf16.msra.mxu0 0
        %251 = vmatprep.subr.bf16.mxu0 0
        %252 = vmatpush2.bf16.msra.mxu0 0
        %253 = vmatprep.subr.bf16.mxu0 0
        %254 = vmatpush2.bf16.msra.mxu0 0
        %255 = vmatprep.subr.bf16.mxu0 0
        %256 = vmatpush2.bf16.msra.mxu0 0
        %257 = vmatprep.subr.bf16.mxu0 0
        %258 = vmatpush2.bf16.msra.mxu0 0
        %259 = vmatprep.subr.bf16.mxu0 0
        %260 = vmatpush2.bf16.msra.mxu0 0
        %261 = vmatprep.subr.bf16.mxu0 0
        %262 = vmatpush2.bf16.msra.mxu0 0
        %263 = vmatprep.subr.bf16.mxu0 0
        %264 = vmatpush2.bf16.msra.mxu0 0
        %265 = vmatprep.mubr.bf16.mxu0 0
        %266 = vmatmul.mubr.bf16.gmra.mxu0 %v224
        %v267 = vpop.f32.mrf.mxu0
        %v268 = vadd.f32 0.0, %v267
        %v269 = vpop.f32.mrf.mxu0
        %v270 = vadd.f32 0.0, %v269
        %v271 = vpop.f32.mrf.mxu0
        %v272 = vpop.f32.mrf.mxu0
        %273 = vdwg.mxu0
        %v276 = vcombine.low %v268, %v270
        %278 = vst [vmem:[%s174] sm:$0xff] %v276
        %s279 = sand.u32 %s92, 1
        %s280 = scalar_lea.sflag [#allocation3], %s279
        %s281 = sand.u32 %s92, 1
        %s282 = smul.addr %s281, 8
        %s283 = scalar_lea.vmem [#allocation2], %s282
        // Predicated region
        $region29: #{tpu_custom_call.1} parent=27 // pred_check
          %p284 = pneg %p102
        $region30: #{tpu_custom_call.1} parent=27 // pred_check_branch
          %286 = sbr.rel (%p284) target = $region32
        $region31: #{tpu_custom_call.1} parent=27 // pred_region
          %s287 = smul.u32 2, %s21
          %s289 = ssub.s32 128, 128
          %290 = vsyncadd %s280, %s289
          %s291 = smul.addr %s20, 2
          %s292 = sadd.s32 %s287, %s291
          %s293 = smul.addr %s292, 64
          %s294 = scalar_lea.hbm %s2, %s293
          %s296 = sshll.u32 %s283, 4
          %s297 = int_to_ptr.vmem [resolvable:$true] %s296
          %299 = dma.vmem_to_hbm [thread:$0]  %s297, 128, %s294, %s280
        $region32: #{tpu_custom_call.1} parent=27 // pred_fallthru
          _
      $region28: #{tpu_custom_call.1} parent=5 // pred_fallthru
        _
      %p300 = scmp.le.s32.totalorder 2, %s11
      // Predicated region
      $region33: #{tpu_custom_call.1} parent=5 // pred_check
        %p301 = pneg %p300
      $region34: #{tpu_custom_call.1} parent=5 // pred_check_branch
        %303 = sbr.rel (%p301) target = $region36
      $region35: #{tpu_custom_call.1} parent=5 // pred_region
        %s304 = ssub.s32 %s11, 2
        // Predicated region
        $region37: #{tpu_custom_call.1} parent=35 // pred_check
          %p305 = pneg %p108
        $region38: #{tpu_custom_call.1} parent=35 // pred_check_branch
          %307 = sbr.rel (%p305) target = $region40
        $region39: #{tpu_custom_call.1} parent=35 // pred_region
          %s308 = sand.u32 %s93, 1
          %s309 = scalar_lea.sflag [#allocation3], %s308
          %s310 = sand.u32 %s93, 1
          %s311 = smul.addr %s310, 8
          %s312 = scalar_lea.vmem [#allocation2], %s311
          %313 = dma.done %s309, 128
        $region40: #{tpu_custom_call.1} parent=35 // pred_fallthru
          _
      $region36: #{tpu_custom_call.1} parent=5 // pred_fallthru
        _
    $region6: #{tpu_custom_call.1} parent=1 // loop_footer
      %s15 = sadd.s32 1, %s11
    $region7: #{tpu_custom_call.1} parent=1 // loop_footer_branch
      %10 = sbr.rel target = $region3
    $region8: #{tpu_custom_call.1} parent=1 // loop_exit
      _
    %314 = vsyncpa [#allocation3], 1
    %s315 = scalar_lea.sflag [#allocation3], 1
    %316 = vsyncpa %s315, 1

</llo_original>
